<compile_context>
chip_gen: v5e
topology: v5e:2x2
jax: 0.10.0
libtpu: 0.0.40
codegen_flags: <defaults>
</compile_context>

<pallas_src>
import functools
import math

import jax
import jax.numpy as jnp
from jax.experimental import pallas as pl
from jax.experimental.pallas import tpu as pltpu


def _round_up(x, m):
    return ((x + m - 1) // m) * m


def _disentangle_kernel(dw_ref, u_ref, o_ref, *, n_intent):
    # dw_ref : (1, n_intent*C)    flattened, constant across grid steps
    # u_ref  : (tile_u, C)        user-embedding tile
    # o_ref  : (tile_u, n_intent*C)  lane-dense output tile
    u = u_ref[...]                           # (tile_u, C)
    dw = dw_ref[...]                         # (1, n_intent*C), f32
    # out[r, i*C + c] = u[r, c] * dw[i, c]   (lane-replicate u across intents)
    u_tiled = jnp.tile(u, (1, n_intent)).astype(jnp.float32)
    o_ref[...] = (u_tiled * dw).astype(o_ref.dtype)


def disentangle_forward(disen_weight_att, weight, user_emb, *, tile_u=512):
    n_users, channel = user_emb.shape
    n_intent, n_rel_m1 = disen_weight_att.shape
    assert weight.shape == (n_rel_m1, channel)

    # ---- hoisted (constant) piece: softmax(att) @ weight, done once in f32 ----
    dw = jax.nn.softmax(disen_weight_att.astype(jnp.float32), axis=-1) @ weight.astype(
        jnp.float32
    )                                               # (n_intent, C)
    dw_flat = dw.reshape(1, n_intent * channel)     # lane-dense layout

    # ---- tile sizing: multiple of 8, no bigger than the (rounded) user count ----
    tile_u = max(8, min(tile_u, _round_up(n_users, 8)))
    n_users_pad = _round_up(n_users, tile_u)
    if n_users_pad != n_users:
        user_emb_p = jnp.pad(user_emb, ((0, n_users_pad - n_users), (0, 0)))
    else:
        user_emb_p = user_emb

    out_dtype = user_emb.dtype
    dbytes = jnp.dtype(out_dtype).itemsize
    cost = pl.CostEstimate(
        flops=n_users_pad * n_intent * channel,
        transcendentals=0,
        bytes_accessed=(
            n_users_pad * channel * dbytes          # read user_emb
            + n_intent * channel * 4                # read dw (f32)
            + n_users_pad * n_intent * channel * dbytes  # write output
        ),
    )

    grid = (n_users_pad // tile_u,)

    out2d = pl.pallas_call(
        functools.partial(_disentangle_kernel, n_intent=n_intent),
        out_shape=jax.ShapeDtypeStruct((n_users_pad, n_intent * channel), out_dtype),
        grid_spec=pltpu.PrefetchScalarGridSpec(
            num_scalar_prefetch=0,
            grid=grid,
            in_specs=[
                # constant flattened disentangle weights, same block every step
                pl.BlockSpec((1, n_intent * channel), lambda i: (0, 0)),
                # user embedding, tiled over users
                pl.BlockSpec((tile_u, channel), lambda i: (i, 0)),
            ],
            out_specs=pl.BlockSpec((tile_u, n_intent * channel), lambda i: (i, 0)),
        ),
        compiler_params=pltpu.CompilerParams(
            dimension_semantics=("parallel",),
        ),
        cost_estimate=cost,
    )(dw_flat, user_emb_p)

    # strip padding; reshape to the module's (n_users, n_intent, C) — contiguous view
    return out2d[:n_users].reshape(n_users, n_intent, channel)


def xavier_uniform(key, shape, dtype=jnp.float32):
    fan_in, fan_out = shape[1], shape[0]
    bound = math.sqrt(6.0 / (fan_in + fan_out))
    return jax.random.uniform(key, shape, dtype, minval=-bound, maxval=bound)


if __name__ == "__main__":
    # module config (small, consistent with the forward's shape requirements)
    channel = 32        # emb_size
    n_users = 16
    n_intent = 4
    n_relation = 5      # => weight has n_relation - 1 = 4 rows

    key = jax.random.PRNGKey(0)
    k1, k2, k3 = jax.random.split(key, 3)

    # deterministic "parameters" (xavier-uniform shapes per __init__)
    weight = xavier_uniform(k1, (n_relation - 1, channel))              # (4, 32)
    disen_weight_att = xavier_uniform(k2, (n_intent, n_relation - 1))   # (4, 4)

    # input
    user_emb = jax.random.normal(k3, (n_users, channel), dtype=jnp.float32)

    out = disentangle_forward(disen_weight_att, weight, user_emb)
    out = jax.block_until_ready(out)

    # pure-JAX reference check
    dw_ref = jax.nn.softmax(disen_weight_att, axis=-1) @ weight          # (n_intent, C)
    ref = user_emb[:, None, :] * dw_ref[None, :, :]                      # (n_users, n_intent, C)
    assert out.shape == (n_users, n_intent, channel)
    assert jnp.allclose(out, ref, atol=1e-5, rtol=1e-5)

    print("KERNEL_OK")
</pallas_src>

<mosaic_0001>
module attributes {stable_mosaic.version = 11 : i64} {
  func.func @_disentangle_kernel(%arg0: i32, %arg1: memref<1x128xf32, #tpu.memory_space<vmem>>, %arg2: memref<16x32xf32, #tpu.memory_space<vmem>>, %arg3: memref<16x128xf32, #tpu.memory_space<vmem>>) attributes {dimension_semantics = [#tpu.dimension_semantics<parallel>], iteration_bounds = array<i64: 1>, scalar_prefetch = 0 : i64, scratch_operands = 0 : i64, tpu.core_type = #tpu.core_type<tc>, window_params = [{pipeline_mode = #tpu.pipeline_mode<synchronous>, transform_indices = @transform_0, window_bounds = array<i64: 1, 128>}, {transform_indices = @transform_1, window_bounds = array<i64: 16, 32>}, {transform_indices = @transform_2, window_bounds = array<i64: 16, 128>}]} {
    %c0 = arith.constant 0 : index
    %c0_0 = arith.constant 0 : index
    %0 = vector.load %arg2[%c0, %c0_0] : memref<16x32xf32, #tpu.memory_space<vmem>>, vector<16x32xf32>
    %c0_1 = arith.constant 0 : index
    %c0_2 = arith.constant 0 : index
    %1 = vector.load %arg1[%c0_1, %c0_2] : memref<1x128xf32, #tpu.memory_space<vmem>>, vector<1x128xf32>
    %2 = tpu.concatenate %0, %0, %0, %0 in 1 : vector<16x32xf32>, vector<16x32xf32>, vector<16x32xf32>, vector<16x32xf32> -> vector<16x128xf32>
    %3 = vector.broadcast %1 : vector<1x128xf32> to vector<16x128xf32>
    %4 = arith.mulf %2, %3 : vector<16x128xf32>
    %c0_3 = arith.constant 0 : index
    %c0_4 = arith.constant 0 : index
    %5 = vector.load %arg3[%c0_3, %c0_4] : memref<16x128xf32, #tpu.memory_space<vmem>>, vector<16x128xf32>
    tpu.vector_store %arg3[%c0_3, %c0_4], %4 {strides = array<i32>} : memref<16x128xf32, #tpu.memory_space<vmem>>, vector<16x128xf32>,
    return
  }
  func.func @transform_0(%arg0: i32) -> (i32, i32) {
    %c0_i32 = arith.constant 0 : i32
    %c0_i32_0 = arith.constant 0 : i32
    %c0_i32_1 = arith.constant 0 : i32
    return %c0_i32, %c0_i32_0 : i32, i32
  }
  func.func @transform_1(%arg0: i32) -> (i32, i32) {
    %c0_i32 = arith.constant 0 : i32
    %c0_i32_0 = arith.constant 0 : i32
    return %arg0, %c0_i32 : i32, i32
  }
  func.func @transform_2(%arg0: i32) -> (i32, i32) {
    %c0_i32 = arith.constant 0 : i32
    %c0_i32_0 = arith.constant 0 : i32
    return %arg0, %c0_i32 : i32, i32
  }
}

</mosaic_0001>

<llo_original>
// kernel: tpu_custom_call.1
$region0: #{tpu_custom_call.1}
  #allocation0 [shape = 'u32[]', space=smem, size = 0x4, offset = 0x4, fixed_abs, tag = 'smem constant byte address 0x4 - core index']
  #allocation1 [shape = 'u32[72,128]{1,0:T(1,128)}', space=vmem, size = 0x9000, scoped, tag = 'internal scratch']
  %s0 = inlined_call_operand.hbm [shape: f32[1,128], index: 0, kind: input, shape index: {}]
  %s1 = inlined_call_operand.hbm [shape: f32[16,32], index: 1, kind: input, shape index: {}]
  %s2 = inlined_call_operand.hbm [shape: f32[16,128], index: 2, kind: output, shape index: {}]
  %s3 = sld [smem:[#allocation0]]
  $region26: #{tpu_custom_call.1} parent=0
    _
  %s5 = ssub.s32 1, %s3
  %s6 = scalar_select 0, %s5, %s3
  $region1: #{tpu_custom_call.1} parent=0
    #allocation2 [shape = 'u8[512]{0}', space=vmem, size = 0x400, scoped, tag = 'input window, operand 0, single buffered']
    #allocation3 [shape = 's32[1]{0}', space=sflag, size = 0x4, scoped, tag = 'scoped memory for tpu_custom_call.1']
    #allocation4 [shape = 's32[1]{0}', space=sflag, size = 0x4, scoped, tag = 'scoped memory for tpu_custom_call.1']
    #allocation5 [shape = 'u8[8192]{0}', space=vmem, size = 0x2000, scoped, tag = 'input window, operand 1, single buffered']
    #allocation6 [shape = 's32[1]{0}', space=sflag, size = 0x4, scoped, tag = 'scoped memory for tpu_custom_call.1']
    #allocation7 [shape = 'u8[8192]{0}', space=vmem, size = 0x2000, scoped, tag = 'output window, operand 0, single buffered']
    %7 = vsyncpa [#allocation3], 0
    %8 = vsyncpa [#allocation6], 0
    %9 = vsyncpa [#allocation4], 0
    // Predicated region
    $region2: #{tpu_custom_call.1} parent=1 // pred_check
      _
    $region3: #{tpu_custom_call.1} parent=1 // pred_check_branch
      %11 = sbr.rel (0) target = $region5
    $region4: #{tpu_custom_call.1} parent=1 // pred_region
      %13 = vsyncadd [#allocation3], 0
      %s15 = sshll.u32 %s0, 4
      %s16 = int_to_ptr.hbm [resolvable:$true] %s15
      %s17 = sshll.u32 [#allocation2], 4
      %s18 = int_to_ptr.vmem [resolvable:$true] %s17
      %20 = dma.hbm_to_vmem [thread:$0]  %s16, 16, %s18, [#allocation3]
    $region5: #{tpu_custom_call.1} parent=1 // pred_fallthru
      _
    // Predicated region
    $region6: #{tpu_custom_call.1} parent=1 // pred_check
      _
    $region7: #{tpu_custom_call.1} parent=1 // pred_check_branch
      %22 = sbr.rel (0) target = $region9
    $region8: #{tpu_custom_call.1} parent=1 // pred_region
      %24 = vsyncadd [#allocation6], 0
      %s25 = sshll.u32 %s1, 4
      %s26 = int_to_ptr.hbm [resolvable:$true] %s25
      %s27 = sshll.u32 [#allocation5], 4
      %s28 = int_to_ptr.vmem [resolvable:$true] %s27
      %33 = dma.hbm_to_vmem [thread:$0]  %s26, 256, %s28, [#allocation6], 128, 128, 8
    $region9: #{tpu_custom_call.1} parent=1 // pred_fallthru
      _
    // Predicated region
    $region10: #{tpu_custom_call.1} parent=1 // pred_check
      _
    $region11: #{tpu_custom_call.1} parent=1 // pred_check_branch
      %35 = sbr.rel (0) target = $region13
    $region12: #{tpu_custom_call.1} parent=1 // pred_region
      %37 = dma.done [#allocation3], 16
    $region13: #{tpu_custom_call.1} parent=1 // pred_fallthru
      _
    // Predicated region
    $region14: #{tpu_custom_call.1} parent=1 // pred_check
      _
    $region15: #{tpu_custom_call.1} parent=1 // pred_check_branch
      %39 = sbr.rel (0) target = $region17
    $region16: #{tpu_custom_call.1} parent=1 // pred_region
      %41 = dma.done [#allocation6], 256
    $region17: #{tpu_custom_call.1} parent=1 // pred_fallthru
      _
    %v42 = vld [vmem:[#allocation5] sm:$0xff]
    %v43 = vld [vmem:[#allocation5 + $0x8] sm:$0xff]
    %v44 = vld [vmem:[#allocation2] sm:$0x1]
    %47 = vrot.lane.b32.xlu0 %v42, 32
    %v48 = vpop.permute.xlu0 %47
    %49 = vrot.lane.b32.xlu0 %v43, 32
    %v50 = vpop.permute.xlu0 %49
    %53 = vrot.lane.b32.xlu0 %v42, 64
    %v54 = vpop.permute.xlu0 %53
    %55 = vrot.lane.b32.xlu0 %v43, 64
    %v56 = vpop.permute.xlu0 %55
    %59 = vrot.lane.b32.xlu0 %v42, 96
    %v60 = vpop.permute.xlu0 %59
    %61 = vrot.lane.b32.xlu0 %v43, 96
    %v62 = vpop.permute.xlu0 %61
    %vm65 = vcmask 261120
    %v66 = vsel %vm65, %v42, %v48
    %v67 = vsel %vm65, %v43, %v50
    %vm68 = vcmask 523264
    %v69 = vsel %vm68, %v66, %v54
    %v70 = vsel %vm68, %v67, %v56
    %vm71 = vcmask 785408
    %v72 = vsel %vm71, %v69, %v60
    %v73 = vsel %vm71, %v70, %v62
    %v75 = vperm.slane %v44, 0
    %v77 = vmul.f32 %v72, %v75
    %v78 = vmul.f32 %v73, %v75
    %79 = vst [vmem:[#allocation7] sm:$0xff] %v77
    %80 = vst [vmem:[#allocation7 + $0x8] sm:$0xff] %v78
    // Predicated region
    $region18: #{tpu_custom_call.1} parent=1 // pred_check
      _
    $region19: #{tpu_custom_call.1} parent=1 // pred_check_branch
      %82 = sbr.rel (0) target = $region21
    $region20: #{tpu_custom_call.1} parent=1 // pred_region
      %84 = vsyncadd [#allocation4], 0
      %s85 = sshll.u32 [#allocation7], 4
      %s86 = int_to_ptr.vmem [resolvable:$true] %s85
      %s87 = sshll.u32 %s2, 4
      %s88 = int_to_ptr.hbm [resolvable:$true] %s87
      %93 = dma.vmem_to_hbm [thread:$0]  %s86, 256, %s88, [#allocation4], 128, 128, 8
    $region21: #{tpu_custom_call.1} parent=1 // pred_fallthru
      _
    // Predicated region
    $region22: #{tpu_custom_call.1} parent=1 // pred_check
      _
    $region23: #{tpu_custom_call.1} parent=1 // pred_check_branch
      %95 = sbr.rel (0) target = $region25
    $region24: #{tpu_custom_call.1} parent=1 // pred_region
      %97 = dma.done [#allocation4], 256
    $region25: #{tpu_custom_call.1} parent=1 // pred_fallthru
      _
    %98 = vsyncpa [#allocation3], 1
    %99 = vsyncpa [#allocation6], 1
    %100 = vsyncpa [#allocation4], 1

</llo_original>
